<compile_context>
chip_gen: v7x
topology: tpu7x:2x2x1
jax: 0.10.0
libtpu: 0.0.40
codegen_flags: <defaults>
</compile_context>

<pallas_src>
import functools
import numpy as np
import jax
import jax.numpy as jnp
from jax.experimental import pallas as pl
from jax.experimental.pallas import tpu as pltpu

K1, K2 = 3, 4            # conv kernel heights over the token axis
KMAX = K2                # the longer of the two kernels
TBC = 8                  # batch rows per inner chunk (sublane-aligned f32 stores)


def _round_up(x, m):
    return (x + m - 1) // m * m


def _cdiv(a, b):
    return -(-a // b)


# -------------------------- Pallas kernel ---------------------------------

def _tconv_kernel(emb_ref, wc_ref, bc_ref, mask_ref, wfc_ref, bfc_ref, out_ref,
                  *, lp, tbc):
    """One batch tile.

    emb_ref  : (TB, Lpad, H)   bf16  raw embedding rows (time-padded)
    wc_ref   : (KMAX, H, 2)    bf16  fused conv weights (col0 = K=3 zero-padded, col1 = K=4)
    bc_ref   : (1, 2)          f32   conv biases
    mask_ref : (LP, 2)         f32   1.0 on valid conv positions, 0.0 on padding
    wfc_ref  : (2, NCP)        f32   FC weight, classes padded to 128 lanes
    bfc_ref  : (1, NCP)        f32   FC bias, padded
    out_ref  : (TB, NCP)       f32
    """
    TB, Lpad, H = emb_ref.shape
    n_chunks = TB // tbc

    # Small constants: load once per grid step, reuse across chunks.
    wc = wc_ref[...]
    bc = bc_ref[...]
    mask = mask_ref[...]
    wfc0 = wfc_ref[0:1, :]
    wfc1 = wfc_ref[1:2, :]
    bfc = bfc_ref[...]

    @pl.loop(0, n_chunks)
    def _(c):
        off = pl.multiple_of(c * tbc, tbc)
        e = emb_ref[pl.ds(off, tbc), :, :]                     # (tbc, Lpad, H) bf16

        # In-kernel im2col: accumulate KMAX shifted (tbc*lp, H) x (H, 2) matmuls,
        # one per kernel-row offset. Both conv branches share the 2 output lanes.
        s = jnp.zeros((tbc * lp, 2), jnp.float32)
        for k in range(KMAX):                                  # static unroll, KMAX=4
            slab = e[:, k:k + lp, :].reshape(tbc * lp, H)
            s = s + jnp.dot(slab, wc[k], preferred_element_type=jnp.float32)

        # Bias + ReLU, then zero the invalid / padded time positions.
        # NOTE: multiplying the mask AFTER ReLU is only correct because ReLU
        # output is >= 0, so injected zeros can never win the max-over-time.
        s = jnp.maximum(s + bc, 0.0)
        s = s.reshape(tbc, lp, 2) * mask
        pooled = jnp.max(s, axis=1)                            # (tbc, 2)

        # Linear(2 -> NC) on the VPU: broadcast multiply-add instead of a K=2
        # MXU contraction. Output lanes are padded to 128 -> lane-dense store.
        logits = pooled[:, 0:1] * wfc0 + pooled[:, 1:2] * wfc1 + bfc
        out_ref[pl.ds(off, tbc), :] = logits


# -------------------------- wrapper / glue ---------------------------------

def tconvolution_forward(x_tokens, params, *, vmem_block_bytes=4 * 1024 * 1024):
    """x_tokens: (B, L) int32 token ids. Returns (B, num_classes) float32."""
    emb_tab = params["embedding"]                       # (V, H) f32
    B, L = x_tokens.shape
    H = emb_tab.shape[1]
    NC = params["wfc"].shape[-1]
    if L < K2:
        # PyTorch's Conv2d would raise for L < kernel height; mirror that rather
        # than silently returning zeros for the K=4 branch.
        raise ValueError(f"sequence length {L} is smaller than conv kernel {K2}")

    # ---- embedding lookup (XLA gather), single bf16 cast ------------------
    # TODO(synk): at production vocab/H, scalar-prefetch the token ids and
    # gather embedding rows in-kernel so the (B, L, H) activation never
    # round-trips through HBM.
    emb = jnp.take(emb_tab, x_tokens, axis=0).astype(jnp.bfloat16)   # (B, L, H)

    # ---- time-axis padding --------------------------------------------------
    lout1 = L - K1 + 1                       # valid positions, K=3 branch
    lout2 = L - K2 + 1                       # valid positions, K=4 branch
    LP = _round_up(lout1, 8)                 # conv positions computed per row
    Lpad = _round_up(LP + KMAX - 1, 16)      # bf16 sublane packing -> clean reshapes
    assert LP % 8 == 0 and Lpad % 16 == 0
    emb = jnp.pad(emb, ((0, 0), (0, Lpad - L), (0, 0)))

    # ---- fused conv weights / biases / validity mask ------------------------
    # wc stays 2 output lanes wide on purpose: the kernel is HBM-bound, so
    # padding the N dim toward MXU width would only inflate VMEM/stores.
    w1 = params["w1"]                                    # (K1, H)
    w2 = params["w2"]                                    # (K2, H)
    w1p = jnp.concatenate([w1, jnp.zeros((KMAX - K1, H), w1.dtype)], axis=0)
    wc = jnp.stack([w1p, w2], axis=-1).astype(jnp.bfloat16)          # (KMAX, H, 2)
    bc = jnp.stack([params["b1"], params["b2"]]).reshape(1, 2).astype(jnp.float32)
    lout = jnp.array([lout1, lout2], jnp.int32)
    mask = (jnp.arange(LP)[:, None] < lout[None, :]).astype(jnp.float32)   # (LP, 2)

    # ---- lane-dense FC params (pad num_classes to 128 lanes) ----------------
    NCP = _round_up(max(NC, 1), 128)
    wfc = jnp.zeros((2, NCP), jnp.float32).at[:, :NC].set(params["wfc"].astype(jnp.float32))
    bfc = jnp.zeros((1, NCP), jnp.float32).at[:, :NC].set(
        params["bfc"].astype(jnp.float32).reshape(1, NC))

    # ---- batch tiling: size the emb block from a VMEM budget ----------------
    row_bytes = Lpad * H * 2                             # bf16 bytes per batch row
    tb_cap = max(TBC, (vmem_block_bytes // row_bytes) // TBC * TBC)
    Bp8 = _round_up(B, TBC)
    TB = min(tb_cap, Bp8)
    if Bp8 >= 2 * TBC and _cdiv(Bp8, TB) < 2:
        TB = _round_up(_cdiv(Bp8, 2), TBC)               # v7x: >= 2 grid steps for 2 TCs
    nb = _cdiv(Bp8, TB)
    Bp = nb * TB
    assert TB % TBC == 0 and NCP % 128 == 0
    if Bp != B:
        emb = jnp.pad(emb, ((0, Bp - B), (0, 0), (0, 0)))

    kernel = functools.partial(_tconv_kernel, lp=LP, tbc=TBC)
    out = pl.pallas_call(
        kernel,
        out_shape=jax.ShapeDtypeStruct((Bp, NCP), jnp.float32),
        grid_spec=pltpu.PrefetchScalarGridSpec(
            num_scalar_prefetch=0,
            grid=(nb,),
            in_specs=[
                pl.BlockSpec((TB, Lpad, H), lambda i: (i, 0, 0)),   # emb (batch-tiled)
                pl.BlockSpec(wc.shape, lambda i: (0, 0, 0)),        # fused conv weights
                pl.BlockSpec(bc.shape, lambda i: (0, 0)),           # conv biases
                pl.BlockSpec(mask.shape, lambda i: (0, 0)),         # validity mask
                pl.BlockSpec(wfc.shape, lambda i: (0, 0)),          # FC weight (padded)
                pl.BlockSpec(bfc.shape, lambda i: (0, 0)),          # FC bias (padded)
            ],
            out_specs=pl.BlockSpec((TB, NCP), lambda i: (i, 0)),
        ),
        compiler_params=pltpu.CompilerParams(
            dimension_semantics=("parallel",),
            vmem_limit_bytes=32 * 1024 * 1024,
        ),
    )(emb, wc, bc, mask, wfc, bfc)
    return out[:B, :NC]


# -------------------------- pure-JAX reference -----------------------------

def reference_forward(x_tokens, params):
    """Float32 reference mirroring the PyTorch forward exactly."""
    emb = jnp.take(params["embedding"], x_tokens, axis=0)          # (B, L, H)
    B, L, _ = emb.shape

    def branch(w, b, K):
        Lout = L - K + 1
        acc = jnp.zeros((B, Lout), jnp.float32)
        for dk in range(K):
            acc = acc + jnp.einsum('blh,h->bl', emb[:, dk:dk + Lout, :], w[dk])
        acc = jax.nn.relu(acc + b)
        return jnp.max(acc, axis=1)                                # (B,)

    o1 = branch(params["w1"], params["b1"], K1)
    o2 = branch(params["w2"], params["b2"], K2)
    feat = jnp.stack([o1, o2], axis=1)                             # (B, 2)
    return feat @ params["wfc"] + params["bfc"].reshape(1, -1)


# -------------------------- deterministic params ---------------------------

def make_params(key, vocab_size, hidden_dim, num_classes, pad_ix):
    ks = jax.random.split(key, 6)
    # The PyTorch module overwrites embedding.weight with the pretrained matrix
    # after construction, so the padding_idx row is NOT zeroed (forward-only).
    pretrained = jax.random.normal(ks[0], (vocab_size, hidden_dim), jnp.float32) * 0.1
    return {
        "embedding": pretrained,
        "w1": jax.random.normal(ks[1], (K1, hidden_dim), jnp.float32) * 0.1,
        "b1": jax.random.normal(ks[2], (), jnp.float32) * 0.1,
        "w2": jax.random.normal(ks[3], (K2, hidden_dim), jnp.float32) * 0.1,
        "b2": jax.random.normal(ks[4], (), jnp.float32) * 0.1,
        "wfc": jax.random.normal(ks[5], (2, num_classes), jnp.float32) * 0.5,
        "bfc": jnp.linspace(-0.1, 0.1, num_classes, dtype=jnp.float32),
    }


if __name__ == "__main__":
    VOCAB, HIDDEN, NUM_CLASSES, PAD_IX = 50, 32, 3, 0
    B, L = 2, 16

    key = jax.random.PRNGKey(0)
    k_tok, k_par = jax.random.split(key)
    params = make_params(k_par, VOCAB, HIDDEN, NUM_CLASSES, PAD_IX)
    x = jax.random.randint(k_tok, (B, L), 0, VOCAB, dtype=jnp.int32)

    out = jax.block_until_ready(tconvolution_forward(x, params))
    ref = jax.block_until_ready(reference_forward(x, params))

    assert out.shape == (B, NUM_CLASSES)
    # bf16 operands (embeddings + conv weights) with f32 accumulation -> ~1e-2 parity.
    np.testing.assert_allclose(np.asarray(out), np.asarray(ref), rtol=2e-2, atol=1e-2)
    print("KERNEL_OK")
</pallas_src>

<mosaic_0001>
module attributes {stable_mosaic.version = 11 : i64} {
  func.func @_tconv_kernel(%arg0: i32, %arg1: memref<8x32x32xbf16, #tpu.memory_space<vmem>>, %arg2: memref<4x32x2xbf16, #tpu.memory_space<vmem>>, %arg3: memref<1x2xf32, #tpu.memory_space<vmem>>, %arg4: memref<16x2xf32, #tpu.memory_space<vmem>>, %arg5: memref<2x128xf32, #tpu.memory_space<vmem>>, %arg6: memref<1x128xf32, #tpu.memory_space<vmem>>, %arg7: memref<8x128xf32, #tpu.memory_space<vmem>>) attributes {dimension_semantics = [#tpu.dimension_semantics<parallel>], iteration_bounds = array<i64: 1>, scalar_prefetch = 0 : i64, scratch_operands = 0 : i64, tpu.core_type = #tpu.core_type<tc>, window_params = [{transform_indices = @transform_0, window_bounds = array<i64: 8, 32, 32>}, {pipeline_mode = #tpu.pipeline_mode<synchronous>, transform_indices = @transform_1, window_bounds = array<i64: 4, 32, 2>}, {pipeline_mode = #tpu.pipeline_mode<synchronous>, transform_indices = @transform_2, window_bounds = array<i64: 1, 2>}, {pipeline_mode = #tpu.pipeline_mode<synchronous>, transform_indices = @transform_3, window_bounds = array<i64: 16, 2>}, {pipeline_mode = #tpu.pipeline_mode<synchronous>, transform_indices = @transform_4, window_bounds = array<i64: 2, 128>}, {pipeline_mode = #tpu.pipeline_mode<synchronous>, transform_indices = @transform_5, window_bounds = array<i64: 1, 128>}, {transform_indices = @transform_6, window_bounds = array<i64: 8, 128>}]} {
    %c0 = arith.constant 0 : index
    %c0_0 = arith.constant 0 : index
    %c0_1 = arith.constant 0 : index
    %0 = vector.load %arg2[%c0, %c0_0, %c0_1] : memref<4x32x2xbf16, #tpu.memory_space<vmem>>, vector<4x32x2xbf16>
    %c0_2 = arith.constant 0 : index
    %c0_3 = arith.constant 0 : index
    %1 = vector.load %arg3[%c0_2, %c0_3] : memref<1x2xf32, #tpu.memory_space<vmem>>, vector<1x2xf32>
    %c0_4 = arith.constant 0 : index
    %c0_5 = arith.constant 0 : index
    %2 = vector.load %arg4[%c0_4, %c0_5] : memref<16x2xf32, #tpu.memory_space<vmem>>, vector<16x2xf32>
    %c0_6 = arith.constant 0 : index
    %c0_7 = arith.constant 0 : index
    %3 = vector.load %arg5[%c0_6, %c0_7] : memref<2x128xf32, #tpu.memory_space<vmem>>, vector<1x128xf32>
    %c1 = arith.constant 1 : index
    %c0_8 = arith.constant 0 : index
    %4 = vector.load %arg5[%c1, %c0_8] : memref<2x128xf32, #tpu.memory_space<vmem>>, vector<1x128xf32>
    %c0_9 = arith.constant 0 : index
    %c0_10 = arith.constant 0 : index
    %5 = vector.load %arg6[%c0_9, %c0_10] : memref<1x128xf32, #tpu.memory_space<vmem>>, vector<1x128xf32>
    %c0_i32 = arith.constant 0 : i32
    %c1_i32 = arith.constant 1 : i32
    %6 = arith.muli %c0_i32, %c1_i32 : i32
    %c0_i32_11 = arith.constant 0 : i32
    %7 = arith.addi %c0_i32_11, %6 : i32
    %c8_i32 = arith.constant 8 : i32
    %8 = arith.muli %7, %c8_i32 : i32
    %9 = tpu.assume_multiple %8, 8 : i32
    %10 = arith.index_cast %9 : i32 to index
    %c0_12 = arith.constant 0 : index
    %c0_13 = arith.constant 0 : index
    %11 = vector.load %arg1[%10, %c0_12, %c0_13] : memref<8x32x32xbf16, #tpu.memory_space<vmem>>, vector<8x32x32xbf16>
    %cst = arith.constant 0.000000e+00 : f32
    %12 = vector.broadcast %cst : f32 to vector<128x2xf32>
    %13 = vector.extract_strided_slice %11 {offsets = [0, 0, 0], sizes = [8, 16, 32], strides = [1, 1, 1]} : vector<8x32x32xbf16> to vector<8x16x32xbf16>
    %14 = vector.shape_cast %13 : vector<8x16x32xbf16> to vector<128x32xbf16>
    %15 = vector.extract_strided_slice %0 {offsets = [0, 0, 0], sizes = [1, 32, 2], strides = [1, 1, 1]} : vector<4x32x2xbf16> to vector<1x32x2xbf16>
    %16 = vector.shape_cast %15 : vector<1x32x2xbf16> to vector<32x2xbf16>
    %cst_14 = arith.constant dense<0.000000e+00> : vector<128x2xf32>
    %17 = tpu.matmul %14, %16, %cst_14 {dimension_numbers = #tpu.dot_dimension_numbers<[1], [0], [0], [1], [0, 0, 1, 1], [], []>} : vector<128x32xbf16>, vector<32x2xbf16>, vector<128x2xf32> -> vector<128x2xf32>
    %18 = arith.addf %12, %17 : vector<128x2xf32>
    %19 = vector.extract_strided_slice %11 {offsets = [0, 1, 0], sizes = [8, 16, 32], strides = [1, 1, 1]} : vector<8x32x32xbf16> to vector<8x16x32xbf16>
    %20 = vector.shape_cast %19 : vector<8x16x32xbf16> to vector<128x32xbf16>
    %21 = vector.extract_strided_slice %0 {offsets = [1, 0, 0], sizes = [1, 32, 2], strides = [1, 1, 1]} : vector<4x32x2xbf16> to vector<1x32x2xbf16>
    %22 = vector.shape_cast %21 : vector<1x32x2xbf16> to vector<32x2xbf16>
    %cst_15 = arith.constant dense<0.000000e+00> : vector<128x2xf32>
    %23 = tpu.matmul %20, %22, %cst_15 {dimension_numbers = #tpu.dot_dimension_numbers<[1], [0], [0], [1], [0, 0, 1, 1], [], []>} : vector<128x32xbf16>, vector<32x2xbf16>, vector<128x2xf32> -> vector<128x2xf32>
    %24 = arith.addf %18, %23 : vector<128x2xf32>
    %25 = vector.extract_strided_slice %11 {offsets = [0, 2, 0], sizes = [8, 16, 32], strides = [1, 1, 1]} : vector<8x32x32xbf16> to vector<8x16x32xbf16>
    %26 = vector.shape_cast %25 : vector<8x16x32xbf16> to vector<128x32xbf16>
    %27 = vector.extract_strided_slice %0 {offsets = [2, 0, 0], sizes = [1, 32, 2], strides = [1, 1, 1]} : vector<4x32x2xbf16> to vector<1x32x2xbf16>
    %28 = vector.shape_cast %27 : vector<1x32x2xbf16> to vector<32x2xbf16>
    %cst_16 = arith.constant dense<0.000000e+00> : vector<128x2xf32>
    %29 = tpu.matmul %26, %28, %cst_16 {dimension_numbers = #tpu.dot_dimension_numbers<[1], [0], [0], [1], [0, 0, 1, 1], [], []>} : vector<128x32xbf16>, vector<32x2xbf16>, vector<128x2xf32> -> vector<128x2xf32>
    %30 = arith.addf %24, %29 : vector<128x2xf32>
    %31 = vector.extract_strided_slice %11 {offsets = [0, 3, 0], sizes = [8, 16, 32], strides = [1, 1, 1]} : vector<8x32x32xbf16> to vector<8x16x32xbf16>
    %32 = vector.shape_cast %31 : vector<8x16x32xbf16> to vector<128x32xbf16>
    %33 = vector.extract_strided_slice %0 {offsets = [3, 0, 0], sizes = [1, 32, 2], strides = [1, 1, 1]} : vector<4x32x2xbf16> to vector<1x32x2xbf16>
    %34 = vector.shape_cast %33 : vector<1x32x2xbf16> to vector<32x2xbf16>
    %cst_17 = arith.constant dense<0.000000e+00> : vector<128x2xf32>
    %35 = tpu.matmul %32, %34, %cst_17 {dimension_numbers = #tpu.dot_dimension_numbers<[1], [0], [0], [1], [0, 0, 1, 1], [], []>} : vector<128x32xbf16>, vector<32x2xbf16>, vector<128x2xf32> -> vector<128x2xf32>
    %36 = arith.addf %30, %35 : vector<128x2xf32>
    %37 = vector.broadcast %1 : vector<1x2xf32> to vector<128x2xf32>
    %38 = arith.addf %36, %37 : vector<128x2xf32>
    %cst_18 = arith.constant 0.000000e+00 : f32
    %39 = vector.broadcast %cst_18 : f32 to vector<128x2xf32>
    %40 = arith.maximumf %38, %39 : vector<128x2xf32>
    %41 = vector.shape_cast %40 : vector<128x2xf32> to vector<8x16x2xf32>
    %42 = vector.shape_cast %2 : vector<16x2xf32> to vector<1x16x2xf32>
    %43 = vector.broadcast %42 : vector<1x16x2xf32> to vector<8x16x2xf32>
    %44 = arith.mulf %41, %43 : vector<8x16x2xf32>
    %cst_19 = arith.constant dense<0xFF800000> : vector<8x2xf32>
    %45 = vector.multi_reduction <maximumf>, %44, %cst_19 [1] : vector<8x16x2xf32> to vector<8x2xf32>
    %46 = vector.extract_strided_slice %45 {offsets = [0, 0], sizes = [8, 1], strides = [1, 1]} : vector<8x2xf32> to vector<8x1xf32>
    %47 = vector.broadcast %46 : vector<8x1xf32> to vector<8x128xf32>
    %48 = vector.broadcast %3 : vector<1x128xf32> to vector<8x128xf32>
    %49 = arith.mulf %47, %48 : vector<8x128xf32>
    %50 = vector.extract_strided_slice %45 {offsets = [0, 1], sizes = [8, 1], strides = [1, 1]} : vector<8x2xf32> to vector<8x1xf32>
    %51 = vector.broadcast %50 : vector<8x1xf32> to vector<8x128xf32>
    %52 = vector.broadcast %4 : vector<1x128xf32> to vector<8x128xf32>
    %53 = arith.mulf %51, %52 : vector<8x128xf32>
    %54 = arith.addf %49, %53 : vector<8x128xf32>
    %55 = vector.broadcast %5 : vector<1x128xf32> to vector<8x128xf32>
    %56 = arith.addf %54, %55 : vector<8x128xf32>
    %57 = arith.index_cast %9 : i32 to index
    %c0_20 = arith.constant 0 : index
    %58 = vector.load %arg7[%57, %c0_20] : memref<8x128xf32, #tpu.memory_space<vmem>>, vector<8x128xf32>
    tpu.vector_store %arg7[%57, %c0_20], %56 {strides = array<i32>} : memref<8x128xf32, #tpu.memory_space<vmem>>, vector<8x128xf32>,
    %c1_i32_21 = arith.constant 1 : i32
    return
  }
  func.func @transform_0(%arg0: i32) -> (i32, i32, i32) {
    %c0_i32 = arith.constant 0 : i32
    %c0_i32_0 = arith.constant 0 : i32
    %c0_i32_1 = arith.constant 0 : i32
    return %arg0, %c0_i32, %c0_i32_0 : i32, i32, i32
  }
  func.func @transform_1(%arg0: i32) -> (i32, i32, i32) {
    %c0_i32 = arith.constant 0 : i32
    %c0_i32_0 = arith.constant 0 : i32
    %c0_i32_1 = arith.constant 0 : i32
    %c0_i32_2 = arith.constant 0 : i32
    return %c0_i32, %c0_i32_0, %c0_i32_1 : i32, i32, i32
  }
  func.func @transform_2(%arg0: i32) -> (i32, i32) {
    %c0_i32 = arith.constant 0 : i32
    %c0_i32_0 = arith.constant 0 : i32
    %c0_i32_1 = arith.constant 0 : i32
    return %c0_i32, %c0_i32_0 : i32, i32
  }
  func.func @transform_3(%arg0: i32) -> (i32, i32) {
    %c0_i32 = arith.constant 0 : i32
    %c0_i32_0 = arith.constant 0 : i32
    %c0_i32_1 = arith.constant 0 : i32
    return %c0_i32, %c0_i32_0 : i32, i32
  }
  func.func @transform_4(%arg0: i32) -> (i32, i32) {
    %c0_i32 = arith.constant 0 : i32
    %c0_i32_0 = arith.constant 0 : i32
    %c0_i32_1 = arith.constant 0 : i32
    return %c0_i32, %c0_i32_0 : i32, i32
  }
  func.func @transform_5(%arg0: i32) -> (i32, i32) {
    %c0_i32 = arith.constant 0 : i32
    %c0_i32_0 = arith.constant 0 : i32
    %c0_i32_1 = arith.constant 0 : i32
    return %c0_i32, %c0_i32_0 : i32, i32
  }
  func.func @transform_6(%arg0: i32) -> (i32, i32) {
    %c0_i32 = arith.constant 0 : i32
    %c0_i32_0 = arith.constant 0 : i32
    return %arg0, %c0_i32 : i32, i32
  }
}

</mosaic_0001>

<llo_original>
// kernel: tpu_custom_call.1
$region0: #{tpu_custom_call.1}
  #allocation0 [shape = 'u32[]', space=smem, size = 0x4, offset = 0x4, fixed_abs, tag = 'smem constant byte address 0x4 - core index']
  #allocation1 [shape = 'u32[144,128]{1,0:T(1,128)}', space=vmem, size = 0x12000, scoped, tag = 'internal scratch']
  %s0 = inlined_call_operand.hbm [shape: bf16[8,32,32], index: 0, kind: input, shape index: {}]
  %s1 = inlined_call_operand.vmem [shape: bf16[4,32,2], index: 1, kind: input, shape index: {}]
  %s2 = inlined_call_operand.vmem [shape: f32[1,2], index: 2, kind: input, shape index: {}]
  %s3 = inlined_call_operand.vmem [shape: f32[16,2], index: 3, kind: input, shape index: {}]
  %s4 = inlined_call_operand.vmem [shape: f32[2,128], index: 4, kind: input, shape index: {}]
  %s5 = inlined_call_operand.vmem [shape: f32[1,128], index: 5, kind: input, shape index: {}]
  %s6 = inlined_call_operand.hbm [shape: f32[8,128], index: 6, kind: output, shape index: {}]
  %s7 = sld [smem:[#allocation0]]
  $region38: #{tpu_custom_call.1} parent=0
    _
  %s9 = ssub.s32 1, %s7
  %s10 = scalar_select 0, %s9, %s7
  $region1: #{tpu_custom_call.1} parent=0
    #allocation2 [shape = 'u8[65536]{0}', space=vmem, size = 0x10000, scoped, tag = 'input window, operand 0, single buffered']
    #allocation3 [shape = 's32[1]{0}', space=sflag, size = 0x4, scoped, tag = 'scoped memory for tpu_custom_call.1']
    #allocation4 [shape = 's32[1]{0}', space=sflag, size = 0x4, scoped, tag = 'scoped memory for tpu_custom_call.1']
    #allocation5 [shape = 'u8[4096]{0}', space=vmem, size = 0x1000, scoped, tag = 'output window, operand 0, single buffered']
    %11 = vsyncpa [#allocation3], 0
    %12 = vsyncpa [#allocation4], 0
    // Predicated region
    $region2: #{tpu_custom_call.1} parent=1 // pred_check
      _
    $region3: #{tpu_custom_call.1} parent=1 // pred_check_branch
      %14 = sbr.rel (0) target = $region5
    $region4: #{tpu_custom_call.1} parent=1 // pred_region
      %s16 = ssub.s32 2048, 2048
      %17 = vsyncadd [#allocation3], %s16
      %s18 = sshll.u32 [#allocation2], 4
      %s19 = int_to_ptr.vmem [resolvable:$true] %s18
      %24 = dma.hbm_to_vmem [thread:$0]  %s0, 2048, %s19, [#allocation3], 64, 64, 4
    $region5: #{tpu_custom_call.1} parent=1 // pred_fallthru
      _
    // Predicated region
    $region6: #{tpu_custom_call.1} parent=1 // pred_check
      _
    $region7: #{tpu_custom_call.1} parent=1 // pred_check_branch
      %26 = sbr.rel (0) target = $region9
    $region8: #{tpu_custom_call.1} parent=1 // pred_region
      _
    $region9: #{tpu_custom_call.1} parent=1 // pred_fallthru
      _
    // Predicated region
    $region10: #{tpu_custom_call.1} parent=1 // pred_check
      _
    $region11: #{tpu_custom_call.1} parent=1 // pred_check_branch
      %28 = sbr.rel (0) target = $region13
    $region12: #{tpu_custom_call.1} parent=1 // pred_region
      _
    $region13: #{tpu_custom_call.1} parent=1 // pred_fallthru
      _
    // Predicated region
    $region14: #{tpu_custom_call.1} parent=1 // pred_check
      _
    $region15: #{tpu_custom_call.1} parent=1 // pred_check_branch
      %30 = sbr.rel (0) target = $region17
    $region16: #{tpu_custom_call.1} parent=1 // pred_region
      _
    $region17: #{tpu_custom_call.1} parent=1 // pred_fallthru
      _
    // Predicated region
    $region18: #{tpu_custom_call.1} parent=1 // pred_check
      _
    $region19: #{tpu_custom_call.1} parent=1 // pred_check_branch
      %32 = sbr.rel (0) target = $region21
    $region20: #{tpu_custom_call.1} parent=1 // pred_region
      _
    $region21: #{tpu_custom_call.1} parent=1 // pred_fallthru
      _
    // Predicated region
    $region22: #{tpu_custom_call.1} parent=1 // pred_check
      _
    $region23: #{tpu_custom_call.1} parent=1 // pred_check_branch
      %34 = sbr.rel (0) target = $region25
    $region24: #{tpu_custom_call.1} parent=1 // pred_region
      _
    $region25: #{tpu_custom_call.1} parent=1 // pred_fallthru
      _
    // Predicated region
    $region26: #{tpu_custom_call.1} parent=1 // pred_check
      _
    $region27: #{tpu_custom_call.1} parent=1 // pred_check_branch
      %36 = sbr.rel (0) target = $region29
    $region28: #{tpu_custom_call.1} parent=1 // pred_region
      %37 = dma.done [#allocation3], 2048
    $region29: #{tpu_custom_call.1} parent=1 // pred_fallthru
      _
    %v39 = vld [vmem:[%s1] sm:$0xf]
    %v40 = vld [vmem:[%s1 + $0x4] sm:$0xf]
    %v41 = vld [vmem:[%s1 + $0x8] sm:$0xf]
    %v42 = vld [vmem:[%s1 + $0xc] sm:$0xf]
    %v43 = vld [vmem:[%s1 + $0x10] sm:$0xf]
    %v44 = vld [vmem:[%s1 + $0x14] sm:$0xf]
    %v45 = vld [vmem:[%s1 + $0x18] sm:$0xf]
    %v46 = vld [vmem:[%s1 + $0x1c] sm:$0xf]
    %v47 = vld [vmem:[%s1 + $0x20] sm:$0xf]
    %v48 = vld [vmem:[%s1 + $0x24] sm:$0xf]
    %v49 = vld [vmem:[%s1 + $0x28] sm:$0xf]
    %v50 = vld [vmem:[%s1 + $0x2c] sm:$0xf]
    %v51 = vld [vmem:[%s1 + $0x30] sm:$0xf]
    %v52 = vld [vmem:[%s1 + $0x34] sm:$0xf]
    %v53 = vld [vmem:[%s1 + $0x38] sm:$0xf]
    %v54 = vld [vmem:[%s1 + $0x3c] sm:$0xf]
    %v55 = vld [vmem:[%s2] sm:$0x1]
    %v56 = vld [vmem:[%s3] sm:$0xff]
    %v57 = vld [vmem:[%s3 + $0x8] sm:$0xff]
    %v58 = vld [vmem:[%s4] sm:$0x1]
    %v59 = vld [vmem:[%s4 + $0x1] sm:$0x1]
    %v60 = vld [vmem:[%s5] sm:$0x1]
    %s61 = smul.u32 0, 4
    %s62 = smul.addr %s61, 4
    %s63 = scalar_lea.vmem [#allocation2], %s62
    %v64 = vld [vmem:[%s63] sm:$0xf]
    %v65 = vld [vmem:[%s63 + $0x4] sm:$0xf]
    %v66 = vld [vmem:[%s63 + $0x8] sm:$0xf]
    %v67 = vld [vmem:[%s63 + $0x10] sm:$0xf]
    %v68 = vld [vmem:[%s63 + $0x14] sm:$0xf]
    %v69 = vld [vmem:[%s63 + $0x18] sm:$0xf]
    %v70 = vld [vmem:[%s63 + $0x20] sm:$0xf]
    %v71 = vld [vmem:[%s63 + $0x24] sm:$0xf]
    %v72 = vld [vmem:[%s63 + $0x28] sm:$0xf]
    %v73 = vld [vmem:[%s63 + $0x30] sm:$0xf]
    %v74 = vld [vmem:[%s63 + $0x34] sm:$0xf]
    %v75 = vld [vmem:[%s63 + $0x38] sm:$0xf]
    %v76 = vld [vmem:[%s63 + $0x40] sm:$0xf]
    %v77 = vld [vmem:[%s63 + $0x44] sm:$0xf]
    %v78 = vld [vmem:[%s63 + $0x48] sm:$0xf]
    %v79 = vld [vmem:[%s63 + $0x50] sm:$0xf]
    %v80 = vld [vmem:[%s63 + $0x54] sm:$0xf]
    %v81 = vld [vmem:[%s63 + $0x58] sm:$0xf]
    %v82 = vld [vmem:[%s63 + $0x60] sm:$0xf]
    %v83 = vld [vmem:[%s63 + $0x64] sm:$0xf]
    %v84 = vld [vmem:[%s63 + $0x68] sm:$0xf]
    %v85 = vld [vmem:[%s63 + $0x70] sm:$0xf]
    %v86 = vld [vmem:[%s63 + $0x74] sm:$0xf]
    %v87 = vld [vmem:[%s63 + $0x78] sm:$0xf]
    %vm88 = vsmask.f32 3328
    %vm89 = vsmask.f32 7440
    %vm90 = vmor %vm88, %vm89
    %v92 = vshrl.u32 %v64, 16
    %v94 = vrot.slane %v92, 4
    %v95 = vshll.u32 %v64, 16
    %v97 = vrot.slane %v95, 5
    %v98 = vor.u32 %v94, %v97
    %v99 = vrot.slane %v98, 4
    %v101 = vshll.u32 %v65, 16
    %v103 = vrot.slane %v101, 5
    %v104 = vsel %vm90, %v99, %v103
    %v105 = vshrl.u32 %v65, 16
    %v107 = vrot.slane %v105, 4
    %v108 = vor.u32 %v107, %v103
    %v109 = vrot.slane %v108, 4
    %v111 = vshll.u32 %v66, 16
    %v113 = vrot.slane %v111, 5
    %v114 = vsel %vm90, %v109, %v113
    %v116 = vshrl.u32 %v67, 16
    %v118 = vrot.slane %v116, 4
    %v119 = vshll.u32 %v67, 16
    %v121 = vrot.slane %v119, 5
    %v122 = vor.u32 %v118, %v121
    %v123 = vrot.slane %v122, 4
    %v125 = vshll.u32 %v68, 16
    %v127 = vrot.slane %v125, 5
    %v128 = vsel %vm90, %v123, %v127
    %v129 = vshrl.u32 %v68, 16
    %v131 = vrot.slane %v129, 4
    %v132 = vor.u32 %v131, %v127
    %v133 = vrot.slane %v132, 4
    %v135 = vshll.u32 %v69, 16
    %v137 = vrot.slane %v135, 5
    %v138 = vsel %vm90, %v133, %v137
    %v140 = vshrl.u32 %v70, 16
    %v142 = vrot.slane %v140, 4
    %v143 = vshll.u32 %v70, 16
    %v145 = vrot.slane %v143, 5
    %v146 = vor.u32 %v142, %v145
    %v147 = vrot.slane %v146, 4
    %v149 = vshll.u32 %v71, 16
    %v151 = vrot.slane %v149, 5
    %v152 = vsel %vm90, %v147, %v151
    %v153 = vshrl.u32 %v71, 16
    %v155 = vrot.slane %v153, 4
    %v156 = vor.u32 %v155, %v151
    %v157 = vrot.slane %v156, 4
    %v159 = vshll.u32 %v72, 16
    %v161 = vrot.slane %v159, 5
    %v162 = vsel %vm90, %v157, %v161
    %v164 = vshrl.u32 %v73, 16
    %v166 = vrot.slane %v164, 4
    %v167 = vshll.u32 %v73, 16
    %v169 = vrot.slane %v167, 5
    %v170 = vor.u32 %v166, %v169
    %v171 = vrot.slane %v170, 4
    %v173 = vshll.u32 %v74, 16
    %v175 = vrot.slane %v173, 5
    %v176 = vsel %vm90, %v171, %v175
    %v177 = vshrl.u32 %v74, 16
    %v179 = vrot.slane %v177, 4
    %v180 = vor.u32 %v179, %v175
    %v181 = vrot.slane %v180, 4
    %v183 = vshll.u32 %v75, 16
    %v185 = vrot.slane %v183, 5
    %v186 = vsel %vm90, %v181, %v185
    %v188 = vshrl.u32 %v76, 16
    %v190 = vrot.slane %v188, 4
    %v191 = vshll.u32 %v76, 16
    %v193 = vrot.slane %v191, 5
    %v194 = vor.u32 %v190, %v193
    %v195 = vrot.slane %v194, 4
    %v197 = vshll.u32 %v77, 16
    %v199 = vrot.slane %v197, 5
    %v200 = vsel %vm90, %v195, %v199
    %v201 = vshrl.u32 %v77, 16
    %v203 = vrot.slane %v201, 4
    %v204 = vor.u32 %v203, %v199
    %v205 = vrot.slane %v204, 4
    %v207 = vshll.u32 %v78, 16
    %v209 = vrot.slane %v207, 5
    %v210 = vsel %vm90, %v205, %v209
    %v212 = vshrl.u32 %v79, 16
    %v214 = vrot.slane %v212, 4
    %v215 = vshll.u32 %v79, 16
    %v217 = vrot.slane %v215, 5
    %v218 = vor.u32 %v214, %v217
    %v219 = vrot.slane %v218, 4
    %v221 = vshll.u32 %v80, 16
    %v223 = vrot.slane %v221, 5
    %v224 = vsel %vm90, %v219, %v223
    %v225 = vshrl.u32 %v80, 16
    %v227 = vrot.slane %v225, 4
    %v228 = vor.u32 %v227, %v223
    %v229 = vrot.slane %v228, 4
    %v231 = vshll.u32 %v81, 16
    %v233 = vrot.slane %v231, 5
    %v234 = vsel %vm90, %v229, %v233
    %v236 = vshrl.u32 %v82, 16
    %v238 = vrot.slane %v236, 4
    %v239 = vshll.u32 %v82, 16
    %v241 = vrot.slane %v239, 5
    %v242 = vor.u32 %v238, %v241
    %v243 = vrot.slane %v242, 4
    %v245 = vshll.u32 %v83, 16
    %v247 = vrot.slane %v245, 5
    %v248 = vsel %vm90, %v243, %v247
    %v249 = vshrl.u32 %v83, 16
    %v251 = vrot.slane %v249, 4
    %v252 = vor.u32 %v251, %v247
    %v253 = vrot.slane %v252, 4
    %v255 = vshll.u32 %v84, 16
    %v257 = vrot.slane %v255, 5
    %v258 = vsel %vm90, %v253, %v257
    %v260 = vshrl.u32 %v85, 16
    %v262 = vrot.slane %v260, 4
    %v263 = vshll.u32 %v85, 16
    %v265 = vrot.slane %v263, 5
    %v266 = vor.u32 %v262, %v265
    %v267 = vrot.slane %v266, 4
    %v269 = vshll.u32 %v86, 16
    %v271 = vrot.slane %v269, 5
    %v272 = vsel %vm90, %v267, %v271
    %v273 = vshrl.u32 %v86, 16
    %v275 = vrot.slane %v273, 4
    %v276 = vor.u32 %v275, %v271
    %v277 = vrot.slane %v276, 4
    %v279 = vshll.u32 %v87, 16
    %v281 = vrot.slane %v279, 5
    %v282 = vsel %vm90, %v277, %v281
    %v283 = vunpack.c.l.b16 %v104
    %v284 = vunpack.c.l.b16 %v114
    %v285 = vunpack.c.l.b16 %v128
    %v286 = vunpack.c.l.b16 %v138
    %v287 = vunpack.c.l.b16 %v152
    %v288 = vunpack.c.l.b16 %v162
    %v289 = vunpack.c.l.b16 %v176
    %v290 = vunpack.c.l.b16 %v186
    %v291 = vunpack.c.l.b16 %v200
    %v292 = vunpack.c.l.b16 %v210
    %v293 = vunpack.c.l.b16 %v224
    %v294 = vunpack.c.l.b16 %v234
    %v295 = vunpack.c.l.b16 %v248
    %v296 = vunpack.c.l.b16 %v258
    %v297 = vunpack.c.l.b16 %v272
    %v298 = vunpack.c.l.b16 %v282
    %v299 = vpack.c.b16 %v284, %v283
    %v300 = vpack.c.b16 %v286, %v285
    %v301 = vpack.c.b16 %v288, %v287
    %v302 = vpack.c.b16 %v290, %v289
    %v303 = vpack.c.b16 %v292, %v291
    %v304 = vpack.c.b16 %v294, %v293
    %v305 = vpack.c.b16 %v296, %v295
    %v306 = vpack.c.b16 %v298, %v297
    %v311 = vunpack.c.l.b16 %v43
    %v312 = vunpack.c.l.b16 %v44
    %v313 = vunpack.c.l.b16 %v45
    %v314 = vunpack.c.l.b16 %v46
    %v315 = vpack.c.b16 %v312, %v311
    %v316 = vpack.c.b16 %v314, %v313
    %vm319 = vcmask 261120
    %v321 = vsel %vm319, %v299, 0
    %v324 = vsel %vm319, %v300, 0
    %v327 = vsel %vm319, %v301, 0
    %v330 = vsel %vm319, %v302, 0
    %v333 = vsel %vm319, %v303, 0
    %v336 = vsel %vm319, %v304, 0
    %v339 = vsel %vm319, %v305, 0
    %v342 = vsel %vm319, %v306, 0
    %344 = vmatprep.subr.bf16.mxu0 0
    %345 = vmatpush1.bf16.msra.mxu0 %v315
    %346 = vmatprep.subr.bf16.mxu0 0
    %347 = vmatpush1.bf16.msra.mxu0 %v316
    %348 = vmatprep.subr.bf16.mxu0 0
    %349 = vmatpush1.bf16.msra.mxu0 0
    %350 = vmatprep.subr.bf16.mxu0 0
    %351 = vmatpush1.bf16.msra.mxu0 0
    %352 = vmatprep.subr.bf16.mxu0 0
    %353 = vmatpush1.bf16.msra.mxu0 0
    %354 = vmatprep.subr.bf16.mxu0 0
    %355 = vmatpush1.bf16.msra.mxu0 0
    %356 = vmatprep.subr.bf16.mxu0 0
    %357 = vmatpush1.bf16.msra.mxu0 0
    %358 = vmatprep.subr.bf16.mxu0 0
    %359 = vmatpush1.bf16.msra.mxu0 0
    %360 = vmatprep.subr.bf16.mxu0 0
    %361 = vmatpush1.bf16.msra.mxu0 0
    %362 = vmatprep.subr.bf16.mxu0 0
    %363 = vmatpush1.bf16.msra.mxu0 0
    %364 = vmatprep.subr.bf16.mxu0 0
    %365 = vmatpush1.bf16.msra.mxu0 0
    %366 = vmatprep.subr.bf16.mxu0 0
    %367 = vmatpush1.bf16.msra.mxu0 0
    %368 = vmatprep.subr.bf16.mxu0 0
    %369 = vmatpush1.bf16.msra.mxu0 0
    %370 = vmatprep.subr.bf16.mxu0 0
    %371 = vmatpush1.bf16.msra.mxu0 0
    %372 = vmatprep.subr.bf16.mxu0 0
    %373 = vmatpush1.bf16.msra.mxu0 0
    %374 = vmatprep.subr.bf16.mxu0 0
    %375 = vmatpush1.bf16.msra.mxu0 0
    %376 = vmatprep.mubr.bf16.mxu0 0
    %377 = vmatmul.mubr.bf16.gmra.mrb[0].mxu0 %v321
    %v378 = vpop.f32.mrb[0].mxu0
    %v379 = vadd.f32 0.0, %v378
    %v380 = vpop.f32.mrb[0].mxu0
    %v381 = vpop.f32.mrb[0].mxu0
    %v382 = vadd.f32 0.0, %v381
    %v383 = vpop.f32.mrb[0].mxu0
    %384 = vmatprep.mubr.bf16.mxu0 0
    %385 = vmatmul.mubr.bf16.gmra.mrb[0].mxu0 %v324
    %v386 = vpop.f32.mrb[0].mxu0
    %v387 = vadd.f32 0.0, %v386
    %v388 = vpop.f32.mrb[0].mxu0
    %v389 = vpop.f32.mrb[0].mxu0
    %v390 = vadd.f32 0.0, %v389
    %v391 = vpop.f32.mrb[0].mxu0
    %392 = vmatprep.mubr.bf16.mxu0 0
    %393 = vmatmul.mubr.bf16.gmra.mrb[0].mxu0 %v327
    %v394 = vpop.f32.mrb[0].mxu0
    %v395 = vadd.f32 0.0, %v394
    %v396 = vpop.f32.mrb[0].mxu0
    %v397 = vpop.f32.mrb[0].mxu0
    %v398 = vadd.f32 0.0, %v397
    %v399 = vpop.f32.mrb[0].mxu0
    %400 = vmatprep.mubr.bf16.mxu0 0
    %401 = vmatmul.mubr.bf16.gmra.mrb[0].mxu0 %v330
    %v402 = vpop.f32.mrb[0].mxu0
    %v403 = vadd.f32 0.0, %v402
    %v404 = vpop.f32.mrb[0].mxu0
    %v405 = vpop.f32.mrb[0].mxu0
    %v406 = vadd.f32 0.0, %v405
    %v407 = vpop.f32.mrb[0].mxu0
    %408 = vmatprep.mubr.bf16.mxu0 0
    %409 = vmatmul.mubr.bf16.gmra.mrb[0].mxu0 %v333
    %v410 = vpop.f32.mrb[0].mxu0
    %v411 = vadd.f32 0.0, %v410
    %v412 = vpop.f32.mrb[0].mxu0
    %v413 = vpop.f32.mrb[0].mxu0
    %v414 = vadd.f32 0.0, %v413
    %v415 = vpop.f32.mrb[0].mxu0
    %416 = vmatprep.mubr.bf16.mxu0 0
    %417 = vmatmul.mubr.bf16.gmra.mrb[0].mxu0 %v336
    %v418 = vpop.f32.mrb[0].mxu0
    %v419 = vadd.f32 0.0, %v418
    %v420 = vpop.f32.mrb[0].mxu0
    %v421 = vpop.f32.mrb[0].mxu0
    %v422 = vadd.f32 0.0, %v421
    %v423 = vpop.f32.mrb[0].mxu0
    %424 = vmatprep.mubr.bf16.mxu0 0
    %425 = vmatmul.mubr.bf16.gmra.mrb[0].mxu0 %v339
    %v426 = vpop.f32.mrb[0].mxu0
    %v427 = vadd.f32 0.0, %v426
    %v428 = vpop.f32.mrb[0].mxu0
    %v429 = vpop.f32.mrb[0].mxu0
    %v430 = vadd.f32 0.0, %v429
    %v431 = vpop.f32.mrb[0].mxu0
    %432 = vmatprep.mubr.bf16.mxu0 0
    %433 = vmatmul.mubr.bf16.gmra.mrb[0].mxu0 %v342
    %v434 = vpop.f32.mrb[0].mxu0
    %v435 = vadd.f32 0.0, %v434
    %v436 = vpop.f32.mrb[0].mxu0
    %v437 = vpop.f32.mrb[0].mxu0
    %v438 = vadd.f32 0.0, %v437
    %v439 = vpop.f32.mrb[0].mxu0
    %440 = vdwg.mxu0
    %v457 = vunpack.c.l.b16 %v64
    %v458 = vunpack.c.l.b16 %v65
    %v459 = vunpack.c.l.b16 %v67
    %v460 = vunpack.c.l.b16 %v68
    %v461 = vunpack.c.l.b16 %v70
    %v462 = vunpack.c.l.b16 %v71
    %v463 = vunpack.c.l.b16 %v73
    %v464 = vunpack.c.l.b16 %v74
    %v465 = vunpack.c.l.b16 %v76
    %v466 = vunpack.c.l.b16 %v77
    %v467 = vunpack.c.l.b16 %v79
    %v468 = vunpack.c.l.b16 %v80
    %v469 = vunpack.c.l.b16 %v82
    %v470 = vunpack.c.l.b16 %v83
    %v471 = vunpack.c.l.b16 %v85
    %v472 = vunpack.c.l.b16 %v86
    %v473 = vpack.c.b16 %v458, %v457
    %v474 = vpack.c.b16 %v460, %v459
    %v475 = vpack.c.b16 %v462, %v461
    %v476 = vpack.c.b16 %v464, %v463
    %v477 = vpack.c.b16 %v466, %v465
    %v478 = vpack.c.b16 %v468, %v467
    %v479 = vpack.c.b16 %v470, %v469
    %v480 = vpack.c.b16 %v472, %v471
    %v485 = vunpack.c.l.b16 %v39
    %v486 = vunpack.c.l.b16 %v40
    %v487 = vunpack.c.l.b16 %v41
    %v488 = vunpack.c.l.b16 %v42
    %v489 = vpack.c.b16 %v486, %v485
    %v490 = vpack.c.b16 %v488, %v487
    %v494 = vsel %vm319, %v473, 0
    %v497 = vsel %vm319, %v474, 0
    %v500 = vsel %vm319, %v475, 0
    %v503 = vsel %vm319, %v476, 0
    %v506 = vsel %vm319, %v477, 0
    %v509 = vsel %vm319, %v478, 0
    %v512 = vsel %vm319, %v479, 0
    %v515 = vsel %vm319, %v480, 0
    %517 = vmatprep.subr.bf16.mxu0 0
    %518 = vmatpush1.bf16.msra.mxu0 %v489
    %519 = vmatprep.subr.bf16.mxu0 0
    %520 = vmatpush1.bf16.msra.mxu0 %v490
    %521 = vmatprep.subr.bf16.mxu0 0
    %522 = vmatpush1.bf16.msra.mxu0 0
    %523 = vmatprep.subr.bf16.mxu0 0
    %524 = vmatpush1.bf16.msra.mxu0 0
    %525 = vmatprep.subr.bf16.mxu0 0
    %526 = vmatpush1.bf16.msra.mxu0 0
    %527 = vmatprep.subr.bf16.mxu0 0
    %528 = vmatpush1.bf16.msra.mxu0 0
    %529 = vmatprep.subr.bf16.mxu0 0
    %530 = vmatpush1.bf16.msra.mxu0 0
    %531 = vmatprep.subr.bf16.mxu0 0
    %532 = vmatpush1.bf16.msra.mxu0 0
    %533 = vmatprep.subr.bf16.mxu0 0
    %534 = vmatpush1.bf16.msra.mxu0 0
    %535 = vmatprep.subr.bf16.mxu0 0
    %536 = vmatpush1.bf16.msra.mxu0 0
    %537 = vmatprep.subr.bf16.mxu0 0
    %538 = vmatpush1.bf16.msra.mxu0 0
    %539 = vmatprep.subr.bf16.mxu0 0
    %540 = vmatpush1.bf16.msra.mxu0 0
    %541 = vmatprep.subr.bf16.mxu0 0
    %542 = vmatpush1.bf16.msra.mxu0 0
    %543 = vmatprep.subr.bf16.mxu0 0
    %544 = vmatpush1.bf16.msra.mxu0 0
    %545 = vmatprep.subr.bf16.mxu0 0
    %546 = vmatpush1.bf16.msra.mxu0 0
    %547 = vmatprep.subr.bf16.mxu0 0
    %548 = vmatpush1.bf16.msra.mxu0 0
    %549 = vmatprep.mubr.bf16.mxu0 0
    %550 = vmatmul.mubr.bf16.gmra.mrb[0].mxu0 %v494
    %v551 = vpop.f32.mrb[0].mxu0
    %v552 = vadd.f32 %v379, %v551
    %v553 = vpop.f32.mrb[0].mxu0
    %v554 = vpop.f32.mrb[0].mxu0
    %v555 = vadd.f32 %v382, %v554
    %v556 = vpop.f32.mrb[0].mxu0
    %557 = vmatprep.mubr.bf16.mxu0 0
    %558 = vmatmul.mubr.bf16.gmra.mrb[0].mxu0 %v497
    %v559 = vpop.f32.mrb[0].mxu0
    %v560 = vadd.f32 %v387, %v559
    %v561 = vpop.f32.mrb[0].mxu0
    %v562 = vpop.f32.mrb[0].mxu0
    %v563 = vadd.f32 %v390, %v562
    %v564 = vpop.f32.mrb[0].mxu0
    %565 = vmatprep.mubr.bf16.mxu0 0
    %566 = vmatmul.mubr.bf16.gmra.mrb[0].mxu0 %v500
    %v567 = vpop.f32.mrb[0].mxu0
    %v568 = vadd.f32 %v395, %v567
    %v569 = vpop.f32.mrb[0].mxu0
    %v570 = vpop.f32.mrb[0].mxu0
    %v571 = vadd.f32 %v398, %v570
    %v572 = vpop.f32.mrb[0].mxu0
    %573 = vmatprep.mubr.bf16.mxu0 0
    %574 = vmatmul.mubr.bf16.gmra.mrb[0].mxu0 %v503
    %v575 = vpop.f32.mrb[0].mxu0
    %v576 = vadd.f32 %v403, %v575
    %v577 = vpop.f32.mrb[0].mxu0
    %v578 = vpop.f32.mrb[0].mxu0
    %v579 = vadd.f32 %v406, %v578
    %v580 = vpop.f32.mrb[0].mxu0
    %581 = vmatprep.mubr.bf16.mxu0 0
    %582 = vmatmul.mubr.bf16.gmra.mrb[0].mxu0 %v506
    %v583 = vpop.f32.mrb[0].mxu0
    %v584 = vadd.f32 %v411, %v583
    %v585 = vpop.f32.mrb[0].mxu0
    %v586 = vpop.f32.mrb[0].mxu0
    %v587 = vadd.f32 %v414, %v586
    %v588 = vpop.f32.mrb[0].mxu0
    %589 = vmatprep.mubr.bf16.mxu0 0
    %590 = vmatmul.mubr.bf16.gmra.mrb[0].mxu0 %v509
    %v591 = vpop.f32.mrb[0].mxu0
    %v592 = vadd.f32 %v419, %v591
    %v593 = vpop.f32.mrb[0].mxu0
    %v594 = vpop.f32.mrb[0].mxu0
    %v595 = vadd.f32 %v422, %v594
    %v596 = vpop.f32.mrb[0].mxu0
    %597 = vmatprep.mubr.bf16.mxu0 0
    %598 = vmatmul.mubr.bf16.gmra.mrb[0].mxu0 %v512
    %v599 = vpop.f32.mrb[0].mxu0
    %v600 = vadd.f32 %v427, %v599
    %v601 = vpop.f32.mrb[0].mxu0
    %v602 = vpop.f32.mrb[0].mxu0
    %v603 = vadd.f32 %v430, %v602
    %v604 = vpop.f32.mrb[0].mxu0
    %605 = vmatprep.mubr.bf16.mxu0 0
    %606 = vmatmul.mubr.bf16.gmra.mrb[0].mxu0 %v515
    %v607 = vpop.f32.mrb[0].mxu0
    %v608 = vadd.f32 %v435, %v607
    %v609 = vpop.f32.mrb[0].mxu0
    %v610 = vpop.f32.mrb[0].mxu0
    %v611 = vadd.f32 %v438, %v610
    %v612 = vpop.f32.mrb[0].mxu0
    %613 = vdwg.mxu0
    %vm622 = vcmask 1042432
    %vm623 = vcmask 1046532
    %vm624 = vmor %vm622, %vm623
    %v625 = vrot.slane %v64, 5
    %v626 = vrot.slane %v625, 4
    %v627 = vrot.slane %v65, 5
    %v628 = vsel %vm624, %v626, %v627
    %v629 = vrot.slane %v627, 4
    %v630 = vrot.slane %v66, 5
    %v631 = vsel %vm624, %v629, %v630
    %v632 = vrot.slane %v67, 5
    %v633 = vrot.slane %v632, 4
    %v634 = vrot.slane %v68, 5
    %v635 = vsel %vm624, %v633, %v634
    %v636 = vrot.slane %v634, 4
    %v637 = vrot.slane %v69, 5
    %v638 = vsel %vm624, %v636, %v637
    %v639 = vrot.slane %v70, 5
    %v640 = vrot.slane %v639, 4
    %v641 = vrot.slane %v71, 5
    %v642 = vsel %vm624, %v640, %v641
    %v643 = vrot.slane %v641, 4
    %v644 = vrot.slane %v72, 5
    %v645 = vsel %vm624, %v643, %v644
    %v646 = vrot.slane %v73, 5
    %v647 = vrot.slane %v646, 4
    %v648 = vrot.slane %v74, 5
    %v649 = vsel %vm624, %v647, %v648
    %v650 = vrot.slane %v648, 4
    %v651 = vrot.slane %v75, 5
    %v652 = vsel %vm624, %v650, %v651
    %v653 = vrot.slane %v76, 5
    %v654 = vrot.slane %v653, 4
    %v655 = vrot.slane %v77, 5
    %v656 = vsel %vm624, %v654, %v655
    %v657 = vrot.slane %v655, 4
    %v658 = vrot.slane %v78, 5
    %v659 = vsel %vm624, %v657, %v658
    %v660 = vrot.slane %v79, 5
    %v661 = vrot.slane %v660, 4
    %v662 = vrot.slane %v80, 5
    %v663 = vsel %vm624, %v661, %v662
    %v664 = vrot.slane %v662, 4
    %v665 = vrot.slane %v81, 5
    %v666 = vsel %vm624, %v664, %v665
    %v667 = vrot.slane %v82, 5
    %v668 = vrot.slane %v667, 4
    %v669 = vrot.slane %v83, 5
    %v670 = vsel %vm624, %v668, %v669
    %v671 = vrot.slane %v669, 4
    %v672 = vrot.slane %v84, 5
    %v673 = vsel %vm624, %v671, %v672
    %v674 = vrot.slane %v85, 5
    %v675 = vrot.slane %v674, 4
    %v676 = vrot.slane %v86, 5
    %v677 = vsel %vm624, %v675, %v676
    %v678 = vrot.slane %v676, 4
    %v679 = vrot.slane %v87, 5
    %v680 = vsel %vm624, %v678, %v679
    %v681 = vunpack.c.l.b16 %v628
    %v682 = vunpack.c.l.b16 %v631
    %v683 = vunpack.c.l.b16 %v635
    %v684 = vunpack.c.l.b16 %v638
    %v685 = vunpack.c.l.b16 %v642
    %v686 = vunpack.c.l.b16 %v645
    %v687 = vunpack.c.l.b16 %v649
    %v688 = vunpack.c.l.b16 %v652
    %v689 = vunpack.c.l.b16 %v656
    %v690 = vunpack.c.l.b16 %v659
    %v691 = vunpack.c.l.b16 %v663
    %v692 = vunpack.c.l.b16 %v666
    %v693 = vunpack.c.l.b16 %v670
    %v694 = vunpack.c.l.b16 %v673
    %v695 = vunpack.c.l.b16 %v677
    %v696 = vunpack.c.l.b16 %v680
    %v697 = vpack.c.b16 %v682, %v681
    %v698 = vpack.c.b16 %v684, %v683
    %v699 = vpack.c.b16 %v686, %v685
    %v700 = vpack.c.b16 %v688, %v687
    %v701 = vpack.c.b16 %v690, %v689
    %v702 = vpack.c.b16 %v692, %v691
    %v703 = vpack.c.b16 %v694, %v693
    %v704 = vpack.c.b16 %v696, %v695
    %v709 = vunpack.c.l.b16 %v47
    %v710 = vunpack.c.l.b16 %v48
    %v711 = vunpack.c.l.b16 %v49
    %v712 = vunpack.c.l.b16 %v50
    %v713 = vpack.c.b16 %v710, %v709
    %v714 = vpack.c.b16 %v712, %v711
    %v718 = vsel %vm319, %v697, 0
    %v721 = vsel %vm319, %v698, 0
    %v724 = vsel %vm319, %v699, 0
    %v727 = vsel %vm319, %v700, 0
    %v730 = vsel %vm319, %v701, 0
    %v733 = vsel %vm319, %v702, 0
    %v736 = vsel %vm319, %v703, 0
    %v739 = vsel %vm319, %v704, 0
    %741 = vmatprep.subr.bf16.mxu0 0
    %742 = vmatpush1.bf16.msra.mxu0 %v713
    %743 = vmatprep.subr.bf16.mxu0 0
    %744 = vmatpush1.bf16.msra.mxu0 %v714
    %745 = vmatprep.subr.bf16.mxu0 0
    %746 = vmatpush1.bf16.msra.mxu0 0
    %747 = vmatprep.subr.bf16.mxu0 0
    %748 = vmatpush1.bf16.msra.mxu0 0
    %749 = vmatprep.subr.bf16.mxu0 0
    %750 = vmatpush1.bf16.msra.mxu0 0
    %751 = vmatprep.subr.bf16.mxu0 0
    %752 = vmatpush1.bf16.msra.mxu0 0
    %753 = vmatprep.subr.bf16.mxu0 0
    %754 = vmatpush1.bf16.msra.mxu0 0
    %755 = vmatprep.subr.bf16.mxu0 0
    %756 = vmatpush1.bf16.msra.mxu0 0
    %757 = vmatprep.subr.bf16.mxu0 0
    %758 = vmatpush1.bf16.msra.mxu0 0
    %759 = vmatprep.subr.bf16.mxu0 0
    %760 = vmatpush1.bf16.msra.mxu0 0
    %761 = vmatprep.subr.bf16.mxu0 0
    %762 = vmatpush1.bf16.msra.mxu0 0
    %763 = vmatprep.subr.bf16.mxu0 0
    %764 = vmatpush1.bf16.msra.mxu0 0
    %765 = vmatprep.subr.bf16.mxu0 0
    %766 = vmatpush1.bf16.msra.mxu0 0
    %767 = vmatprep.subr.bf16.mxu0 0
    %768 = vmatpush1.bf16.msra.mxu0 0
    %769 = vmatprep.subr.bf16.mxu0 0
    %770 = vmatpush1.bf16.msra.mxu0 0
    %771 = vmatprep.subr.bf16.mxu0 0
    %772 = vmatpush1.bf16.msra.mxu0 0
    %773 = vmatprep.mubr.bf16.mxu0 0
    %774 = vmatmul.mubr.bf16.gmra.mrb[0].mxu0 %v718
    %v775 = vpop.f32.mrb[0].mxu0
    %v776 = vadd.f32 0.0, %v775
    %v777 = vpop.f32.mrb[0].mxu0
    %v778 = vpop.f32.mrb[0].mxu0
    %v779 = vadd.f32 0.0, %v778
    %v780 = vpop.f32.mrb[0].mxu0
    %781 = vmatprep.mubr.bf16.mxu0 0
    %782 = vmatmul.mubr.bf16.gmra.mrb[0].mxu0 %v721
    %v783 = vpop.f32.mrb[0].mxu0
    %v784 = vadd.f32 0.0, %v783
    %v785 = vpop.f32.mrb[0].mxu0
    %v786 = vpop.f32.mrb[0].mxu0
    %v787 = vadd.f32 0.0, %v786
    %v788 = vpop.f32.mrb[0].mxu0
    %789 = vmatprep.mubr.bf16.mxu0 0
    %790 = vmatmul.mubr.bf16.gmra.mrb[0].mxu0 %v724
    %v791 = vpop.f32.mrb[0].mxu0
    %v792 = vadd.f32 0.0, %v791
    %v793 = vpop.f32.mrb[0].mxu0
    %v794 = vpop.f32.mrb[0].mxu0
    %v795 = vadd.f32 0.0, %v794
    %v796 = vpop.f32.mrb[0].mxu0
    %797 = vmatprep.mubr.bf16.mxu0 0
    %798 = vmatmul.mubr.bf16.gmra.mrb[0].mxu0 %v727
    %v799 = vpop.f32.mrb[0].mxu0
    %v800 = vadd.f32 0.0, %v799
    %v801 = vpop.f32.mrb[0].mxu0
    %v802 = vpop.f32.mrb[0].mxu0
    %v803 = vadd.f32 0.0, %v802
    %v804 = vpop.f32.mrb[0].mxu0
    %805 = vmatprep.mubr.bf16.mxu0 0
    %806 = vmatmul.mubr.bf16.gmra.mrb[0].mxu0 %v730
    %v807 = vpop.f32.mrb[0].mxu0
    %v808 = vadd.f32 0.0, %v807
    %v809 = vpop.f32.mrb[0].mxu0
    %v810 = vpop.f32.mrb[0].mxu0
    %v811 = vadd.f32 0.0, %v810
    %v812 = vpop.f32.mrb[0].mxu0
    %813 = vmatprep.mubr.bf16.mxu0 0
    %814 = vmatmul.mubr.bf16.gmra.mrb[0].mxu0 %v733
    %v815 = vpop.f32.mrb[0].mxu0
    %v816 = vadd.f32 0.0, %v815
    %v817 = vpop.f32.mrb[0].mxu0
    %v818 = vpop.f32.mrb[0].mxu0
    %v819 = vadd.f32 0.0, %v818
    %v820 = vpop.f32.mrb[0].mxu0
    %821 = vmatprep.mubr.bf16.mxu0 0
    %822 = vmatmul.mubr.bf16.gmra.mrb[0].mxu0 %v736
    %v823 = vpop.f32.mrb[0].mxu0
    %v824 = vadd.f32 0.0, %v823
    %v825 = vpop.f32.mrb[0].mxu0
    %v826 = vpop.f32.mrb[0].mxu0
    %v827 = vadd.f32 0.0, %v826
    %v828 = vpop.f32.mrb[0].mxu0
    %829 = vmatprep.mubr.bf16.mxu0 0
    %830 = vmatmul.mubr.bf16.gmra.mrb[0].mxu0 %v739
    %v831 = vpop.f32.mrb[0].mxu0
    %v832 = vadd.f32 0.0, %v831
    %v833 = vpop.f32.mrb[0].mxu0
    %v834 = vpop.f32.mrb[0].mxu0
    %v835 = vadd.f32 0.0, %v834
    %v836 = vpop.f32.mrb[0].mxu0
    %837 = vdwg.mxu0
    %v838 = vadd.f32 %v552, %v776
    %v839 = vadd.f32 %v555, %v779
    %v840 = vadd.f32 %v560, %v784
    %v841 = vadd.f32 %v563, %v787
    %v842 = vadd.f32 %v568, %v792
    %v843 = vadd.f32 %v571, %v795
    %v844 = vadd.f32 %v576, %v800
    %v845 = vadd.f32 %v579, %v803
    %v846 = vadd.f32 %v584, %v808
    %v847 = vadd.f32 %v587, %v811
    %v848 = vadd.f32 %v592, %v816
    %v849 = vadd.f32 %v595, %v819
    %v850 = vadd.f32 %v600, %v824
    %v851 = vadd.f32 %v603, %v827
    %v852 = vadd.f32 %v608, %v832
    %v853 = vadd.f32 %v611, %v835
    %vm854 = vsmask.f32 2304
    %vm855 = vsmask.f32 6416
    %vm856 = vmor %vm854, %vm855
    %v857 = vrot.slane %v92, 5
    %v858 = vrot.slane %v95, 6
    %v859 = vor.u32 %v857, %v858
    %v860 = vrot.slane %v859, 4
    %v861 = vrot.slane %v105, 5
    %v862 = vrot.slane %v101, 6
    %v863 = vor.u32 %v861, %v862
    %v864 = vsel %vm856, %v860, %v863
    %v865 = vrot.slane %v863, 4
    %v866 = vshrl.u32 %v66, 16
    %v868 = vrot.slane %v866, 5
    %v869 = vrot.slane %v111, 6
    %v870 = vor.u32 %v868, %v869
    %v871 = vsel %vm856, %v865, %v870
    %v872 = vrot.slane %v116, 5
    %v873 = vrot.slane %v119, 6
    %v874 = vor.u32 %v872, %v873
    %v875 = vrot.slane %v874, 4
    %v876 = vrot.slane %v129, 5
    %v877 = vrot.slane %v125, 6
    %v878 = vor.u32 %v876, %v877
    %v879 = vsel %vm856, %v875, %v878
    %v880 = vrot.slane %v878, 4
    %v881 = vshrl.u32 %v69, 16
    %v883 = vrot.slane %v881, 5
    %v884 = vrot.slane %v135, 6
    %v885 = vor.u32 %v883, %v884
    %v886 = vsel %vm856, %v880, %v885
    %v887 = vrot.slane %v140, 5
    %v888 = vrot.slane %v143, 6
    %v889 = vor.u32 %v887, %v888
    %v890 = vrot.slane %v889, 4
    %v891 = vrot.slane %v153, 5
    %v892 = vrot.slane %v149, 6
    %v893 = vor.u32 %v891, %v892
    %v894 = vsel %vm856, %v890, %v893
    %v895 = vrot.slane %v893, 4
    %v896 = vshrl.u32 %v72, 16
    %v898 = vrot.slane %v896, 5
    %v899 = vrot.slane %v159, 6
    %v900 = vor.u32 %v898, %v899
    %v901 = vsel %vm856, %v895, %v900
    %v902 = vrot.slane %v164, 5
    %v903 = vrot.slane %v167, 6
    %v904 = vor.u32 %v902, %v903
    %v905 = vrot.slane %v904, 4
    %v906 = vrot.slane %v177, 5
    %v907 = vrot.slane %v173, 6
    %v908 = vor.u32 %v906, %v907
    %v909 = vsel %vm856, %v905, %v908
    %v910 = vrot.slane %v908, 4
    %v911 = vshrl.u32 %v75, 16
    %v913 = vrot.slane %v911, 5
    %v914 = vrot.slane %v183, 6
    %v915 = vor.u32 %v913, %v914
    %v916 = vsel %vm856, %v910, %v915
    %v917 = vrot.slane %v188, 5
    %v918 = vrot.slane %v191, 6
    %v919 = vor.u32 %v917, %v918
    %v920 = vrot.slane %v919, 4
    %v921 = vrot.slane %v201, 5
    %v922 = vrot.slane %v197, 6
    %v923 = vor.u32 %v921, %v922
    %v924 = vsel %vm856, %v920, %v923
    %v925 = vrot.slane %v923, 4
    %v926 = vshrl.u32 %v78, 16
    %v928 = vrot.slane %v926, 5
    %v929 = vrot.slane %v207, 6
    %v930 = vor.u32 %v928, %v929
    %v931 = vsel %vm856, %v925, %v930
    %v932 = vrot.slane %v212, 5
    %v933 = vrot.slane %v215, 6
    %v934 = vor.u32 %v932, %v933
    %v935 = vrot.slane %v934, 4
    %v936 = vrot.slane %v225, 5
    %v937 = vrot.slane %v221, 6
    %v938 = vor.u32 %v936, %v937
    %v939 = vsel %vm856, %v935, %v938
    %v940 = vrot.slane %v938, 4
    %v941 = vshrl.u32 %v81, 16
    %v943 = vrot.slane %v941, 5
    %v944 = vrot.slane %v231, 6
    %v945 = vor.u32 %v943, %v944
    %v946 = vsel %vm856, %v940, %v945
    %v947 = vrot.slane %v236, 5
    %v948 = vrot.slane %v239, 6
    %v949 = vor.u32 %v947, %v948
    %v950 = vrot.slane %v949, 4
    %v951 = vrot.slane %v249, 5
    %v952 = vrot.slane %v245, 6
    %v953 = vor.u32 %v951, %v952
    %v954 = vsel %vm856, %v950, %v953
    %v955 = vrot.slane %v953, 4
    %v956 = vshrl.u32 %v84, 16
    %v958 = vrot.slane %v956, 5
    %v959 = vrot.slane %v255, 6
    %v960 = vor.u32 %v958, %v959
    %v961 = vsel %vm856, %v955, %v960
    %v962 = vrot.slane %v260, 5
    %v963 = vrot.slane %v263, 6
    %v964 = vor.u32 %v962, %v963
    %v965 = vrot.slane %v964, 4
    %v966 = vrot.slane %v273, 5
    %v967 = vrot.slane %v269, 6
    %v968 = vor.u32 %v966, %v967
    %v969 = vsel %vm856, %v965, %v968
    %v970 = vrot.slane %v968, 4
    %v971 = vshrl.u32 %v87, 16
    %v973 = vrot.slane %v971, 5
    %v974 = vrot.slane %v279, 6
    %v975 = vor.u32 %v973, %v974
    %v976 = vsel %vm856, %v970, %v975
    %v977 = vunpack.c.l.b16 %v864
    %v978 = vunpack.c.l.b16 %v871
    %v979 = vunpack.c.l.b16 %v879
    %v980 = vunpack.c.l.b16 %v886
    %v981 = vunpack.c.l.b16 %v894
    %v982 = vunpack.c.l.b16 %v901
    %v983 = vunpack.c.l.b16 %v909
    %v984 = vunpack.c.l.b16 %v916
    %v985 = vunpack.c.l.b16 %v924
    %v986 = vunpack.c.l.b16 %v931
    %v987 = vunpack.c.l.b16 %v939
    %v988 = vunpack.c.l.b16 %v946
    %v989 = vunpack.c.l.b16 %v954
    %v990 = vunpack.c.l.b16 %v961
    %v991 = vunpack.c.l.b16 %v969
    %v992 = vunpack.c.l.b16 %v976
    %v993 = vpack.c.b16 %v978, %v977
    %v994 = vpack.c.b16 %v980, %v979
    %v995 = vpack.c.b16 %v982, %v981
    %v996 = vpack.c.b16 %v984, %v983
    %v997 = vpack.c.b16 %v986, %v985
    %v998 = vpack.c.b16 %v988, %v987
    %v999 = vpack.c.b16 %v990, %v989
    %v1000 = vpack.c.b16 %v992, %v991
    %v1005 = vunpack.c.l.b16 %v51
    %v1006 = vunpack.c.l.b16 %v52
    %v1007 = vunpack.c.l.b16 %v53
    %v1008 = vunpack.c.l.b16 %v54
    %v1009 = vpack.c.b16 %v1006, %v1005
    %v1010 = vpack.c.b16 %v1008, %v1007
    %v1014 = vsel %vm319, %v993, 0
    %v1017 = vsel %vm319, %v994, 0
    %v1020 = vsel %vm319, %v995, 0
    %v1023 = vsel %vm319, %v996, 0
    %v1026 = vsel %vm319, %v997, 0
    %v1029 = vsel %vm319, %v998, 0
    %v1032 = vsel %vm319, %v999, 0
    %v1035 = vsel %vm319, %v1000, 0
    %1037 = vmatprep.subr.bf16.mxu0 0
    %1038 = vmatpush1.bf16.msra.mxu0 %v1009
    %1039 = vmatprep.subr.bf16.mxu0 0
    %1040 = vmatpush1.bf16.msra.mxu0 %v1010
    %1041 = vmatprep.subr.bf16.mxu0 0
    %1042 = vmatpush1.bf16.msra.mxu0 0
    %1043 = vmatprep.subr.bf16.mxu0 0
    %1044 = vmatpush1.bf16.msra.mxu0 0
    %1045 = vmatprep.subr.bf16.mxu0 0
    %1046 = vmatpush1.bf16.msra.mxu0 0
    %1047 = vmatprep.subr.bf16.mxu0 0
    %1048 = vmatpush1.bf16.msra.mxu0 0
    %1049 = vmatprep.subr.bf16.mxu0 0
    %1050 = vmatpush1.bf16.msra.mxu0 0
    %1051 = vmatprep.subr.bf16.mxu0 0
    %1052 = vmatpush1.bf16.msra.mxu0 0
    %1053 = vmatprep.subr.bf16.mxu0 0
    %1054 = vmatpush1.bf16.msra.mxu0 0
    %1055 = vmatprep.subr.bf16.mxu0 0
    %1056 = vmatpush1.bf16.msra.mxu0 0
    %1057 = vmatprep.subr.bf16.mxu0 0
    %1058 = vmatpush1.bf16.msra.mxu0 0
    %1059 = vmatprep.subr.bf16.mxu0 0
    %1060 = vmatpush1.bf16.msra.mxu0 0
    %1061 = vmatprep.subr.bf16.mxu0 0
    %1062 = vmatpush1.bf16.msra.mxu0 0
    %1063 = vmatprep.subr.bf16.mxu0 0
    %1064 = vmatpush1.bf16.msra.mxu0 0
    %1065 = vmatprep.subr.bf16.mxu0 0
    %1066 = vmatpush1.bf16.msra.mxu0 0
    %1067 = vmatprep.subr.bf16.mxu0 0
    %1068 = vmatpush1.bf16.msra.mxu0 0
    %1069 = vmatprep.mubr.bf16.mxu0 0
    %1070 = vmatmul.mubr.bf16.gmra.mrb[0].mxu0 %v1014
    %v1071 = vpop.f32.mrb[0].mxu0
    %v1072 = vadd.f32 0.0, %v1071
    %v1073 = vpop.f32.mrb[0].mxu0
    %v1074 = vpop.f32.mrb[0].mxu0
    %v1075 = vadd.f32 0.0, %v1074
    %v1076 = vpop.f32.mrb[0].mxu0
    %1077 = vmatprep.mubr.bf16.mxu0 0
    %1078 = vmatmul.mubr.bf16.gmra.mrb[0].mxu0 %v1017
    %v1079 = vpop.f32.mrb[0].mxu0
    %v1080 = vadd.f32 0.0, %v1079
    %v1081 = vpop.f32.mrb[0].mxu0
    %v1082 = vpop.f32.mrb[0].mxu0
    %v1083 = vadd.f32 0.0, %v1082
    %v1084 = vpop.f32.mrb[0].mxu0
    %1085 = vmatprep.mubr.bf16.mxu0 0
    %1086 = vmatmul.mubr.bf16.gmra.mrb[0].mxu0 %v1020
    %v1087 = vpop.f32.mrb[0].mxu0
    %v1088 = vadd.f32 0.0, %v1087
    %v1089 = vpop.f32.mrb[0].mxu0
    %v1090 = vpop.f32.mrb[0].mxu0
    %v1091 = vadd.f32 0.0, %v1090
    %v1092 = vpop.f32.mrb[0].mxu0
    %1093 = vmatprep.mubr.bf16.mxu0 0
    %1094 = vmatmul.mubr.bf16.gmra.mrb[0].mxu0 %v1023
    %v1095 = vpop.f32.mrb[0].mxu0
    %v1096 = vadd.f32 0.0, %v1095
    %v1097 = vpop.f32.mrb[0].mxu0
    %v1098 = vpop.f32.mrb[0].mxu0
    %v1099 = vadd.f32 0.0, %v1098
    %v1100 = vpop.f32.mrb[0].mxu0
    %1101 = vmatprep.mubr.bf16.mxu0 0
    %1102 = vmatmul.mubr.bf16.gmra.mrb[0].mxu0 %v1026
    %v1103 = vpop.f32.mrb[0].mxu0
    %v1104 = vadd.f32 0.0, %v1103
    %v1105 = vpop.f32.mrb[0].mxu0
    %v1106 = vpop.f32.mrb[0].mxu0
    %v1107 = vadd.f32 0.0, %v1106
    %v1108 = vpop.f32.mrb[0].mxu0
    %1109 = vmatprep.mubr.bf16.mxu0 0
    %1110 = vmatmul.mubr.bf16.gmra.mrb[0].mxu0 %v1029
    %v1111 = vpop.f32.mrb[0].mxu0
    %v1112 = vadd.f32 0.0, %v1111
    %v1113 = vpop.f32.mrb[0].mxu0
    %v1114 = vpop.f32.mrb[0].mxu0
    %v1115 = vadd.f32 0.0, %v1114
    %v1116 = vpop.f32.mrb[0].mxu0
    %1117 = vmatprep.mubr.bf16.mxu0 0
    %1118 = vmatmul.mubr.bf16.gmra.mrb[0].mxu0 %v1032
    %v1119 = vpop.f32.mrb[0].mxu0
    %v1120 = vadd.f32 0.0, %v1119
    %v1121 = vpop.f32.mrb[0].mxu0
    %v1122 = vpop.f32.mrb[0].mxu0
    %v1123 = vadd.f32 0.0, %v1122
    %v1124 = vpop.f32.mrb[0].mxu0
    %1125 = vmatprep.mubr.bf16.mxu0 0
    %1126 = vmatmul.mubr.bf16.gmra.mrb[0].mxu0 %v1035
    %v1127 = vpop.f32.mrb[0].mxu0
    %v1128 = vadd.f32 0.0, %v1127
    %v1129 = vpop.f32.mrb[0].mxu0
    %v1130 = vpop.f32.mrb[0].mxu0
    %v1131 = vadd.f32 0.0, %v1130
    %v1132 = vpop.f32.mrb[0].mxu0
    %1133 = vdwg.mxu0
    %v1134 = vadd.f32 %v838, %v1072
    %v1135 = vadd.f32 %v839, %v1075
    %v1136 = vadd.f32 %v840, %v1080
    %v1137 = vadd.f32 %v841, %v1083
    %v1138 = vadd.f32 %v842, %v1088
    %v1139 = vadd.f32 %v843, %v1091
    %v1140 = vadd.f32 %v844, %v1096
    %v1141 = vadd.f32 %v845, %v1099
    %v1142 = vadd.f32 %v846, %v1104
    %v1143 = vadd.f32 %v847, %v1107
    %v1144 = vadd.f32 %v848, %v1112
    %v1145 = vadd.f32 %v849, %v1115
    %v1146 = vadd.f32 %v850, %v1120
    %v1147 = vadd.f32 %v851, %v1123
    %v1148 = vadd.f32 %v852, %v1128
    %v1149 = vadd.f32 %v853, %v1131
    %v1151 = vlaneseq
    %v1152 = vshrl.u32 %v1151, 7
    %v1153 = vsub.s32 0, %v1152
    %v1154 = vrot.slane %v55, %v1153
    %v1156 = vadd.f32 %v1134, %v1154
    %v1157 = vadd.f32 %v1135, %v1154
    %v1158 = vadd.f32 %v1136, %v1154
    %v1159 = vadd.f32 %v1137, %v1154
    %v1160 = vadd.f32 %v1138, %v1154
    %v1161 = vadd.f32 %v1139, %v1154
    %v1162 = vadd.f32 %v1140, %v1154
    %v1163 = vadd.f32 %v1141, %v1154
    %v1164 = vadd.f32 %v1142, %v1154
    %v1165 = vadd.f32 %v1143, %v1154
    %v1166 = vadd.f32 %v1144, %v1154
    %v1167 = vadd.f32 %v1145, %v1154
    %v1168 = vadd.f32 %v1146, %v1154
    %v1169 = vadd.f32 %v1147, %v1154
    %v1170 = vadd.f32 %v1148, %v1154
    %v1171 = vadd.f32 %v1149, %v1154
    %v1172 = vmax.f32 %v1156, 0.0
    %v1173 = vmax.f32 %v1157, 0.0
    %v1174 = vmax.f32 %v1158, 0.0
    %v1175 = vmax.f32 %v1159, 0.0
    %v1176 = vmax.f32 %v1160, 0.0
    %v1177 = vmax.f32 %v1161, 0.0
    %v1178 = vmax.f32 %v1162, 0.0
    %v1179 = vmax.f32 %v1163, 0.0
    %v1180 = vmax.f32 %v1164, 0.0
    %v1181 = vmax.f32 %v1165, 0.0
    %v1182 = vmax.f32 %v1166, 0.0
    %v1183 = vmax.f32 %v1167, 0.0
    %v1184 = vmax.f32 %v1168, 0.0
    %v1185 = vmax.f32 %v1169, 0.0
    %v1186 = vmax.f32 %v1170, 0.0
    %v1187 = vmax.f32 %v1171, 0.0
    %v1188 = vmul.f32 %v1172, %v56
    %v1189 = vmul.f32 %v1173, %v57
    %v1190 = vmul.f32 %v1174, %v56
    %v1191 = vmul.f32 %v1175, %v57
    %v1192 = vmul.f32 %v1176, %v56
    %v1193 = vmul.f32 %v1177, %v57
    %v1194 = vmul.f32 %v1178, %v56
    %v1195 = vmul.f32 %v1179, %v57
    %v1196 = vmul.f32 %v1180, %v56
    %v1197 = vmul.f32 %v1181, %v57
    %v1198 = vmul.f32 %v1182, %v56
    %v1199 = vmul.f32 %v1183, %v57
    %v1200 = vmul.f32 %v1184, %v56
    %v1201 = vmul.f32 %v1185, %v57
    %v1202 = vmul.f32 %v1186, %v56
    %v1203 = vmul.f32 %v1187, %v57
    %vm1204 = vcmask 15360
    %v1205 = vsel %vm1204, %v1188, -inf
    %v1206 = vsel %vm1204, %v1189, -inf
    %v1207 = vmax.f32 %v1205, %v1206
    %v1208 = vrot.slane %v1207, 4
    %v1209 = vmax.f32 %v1207, %v1208
    %v1210 = vrot.slane %v1209, 2
    %v1211 = vmax.f32 %v1209, %v1210
    %v1212 = vrot.slane %v1211, 1
    %v1213 = vmax.f32 %v1211, %v1212
    %v1214 = vsel %vm1204, %v1190, -inf
    %v1215 = vsel %vm1204, %v1191, -inf
    %v1216 = vmax.f32 %v1214, %v1215
    %v1217 = vrot.slane %v1216, 4
    %v1218 = vmax.f32 %v1216, %v1217
    %v1219 = vrot.slane %v1218, 2
    %v1220 = vmax.f32 %v1218, %v1219
    %v1221 = vrot.slane %v1220, 1
    %v1222 = vmax.f32 %v1220, %v1221
    %v1223 = vsel %vm1204, %v1192, -inf
    %v1224 = vsel %vm1204, %v1193, -inf
    %v1225 = vmax.f32 %v1223, %v1224
    %v1226 = vrot.slane %v1225, 4
    %v1227 = vmax.f32 %v1225, %v1226
    %v1228 = vrot.slane %v1227, 2
    %v1229 = vmax.f32 %v1227, %v1228
    %v1230 = vrot.slane %v1229, 1
    %v1231 = vmax.f32 %v1229, %v1230
    %v1232 = vsel %vm1204, %v1194, -inf
    %v1233 = vsel %vm1204, %v1195, -inf
    %v1234 = vmax.f32 %v1232, %v1233
    %v1235 = vrot.slane %v1234, 4
    %v1236 = vmax.f32 %v1234, %v1235
    %v1237 = vrot.slane %v1236, 2
    %v1238 = vmax.f32 %v1236, %v1237
    %v1239 = vrot.slane %v1238, 1
    %v1240 = vmax.f32 %v1238, %v1239
    %v1241 = vsel %vm1204, %v1196, -inf
    %v1242 = vsel %vm1204, %v1197, -inf
    %v1243 = vmax.f32 %v1241, %v1242
    %v1244 = vrot.slane %v1243, 4
    %v1245 = vmax.f32 %v1243, %v1244
    %v1246 = vrot.slane %v1245, 2
    %v1247 = vmax.f32 %v1245, %v1246
    %v1248 = vrot.slane %v1247, 1
    %v1249 = vmax.f32 %v1247, %v1248
    %v1250 = vsel %vm1204, %v1198, -inf
    %v1251 = vsel %vm1204, %v1199, -inf
    %v1252 = vmax.f32 %v1250, %v1251
    %v1253 = vrot.slane %v1252, 4
    %v1254 = vmax.f32 %v1252, %v1253
    %v1255 = vrot.slane %v1254, 2
    %v1256 = vmax.f32 %v1254, %v1255
    %v1257 = vrot.slane %v1256, 1
    %v1258 = vmax.f32 %v1256, %v1257
    %v1259 = vsel %vm1204, %v1200, -inf
    %v1260 = vsel %vm1204, %v1201, -inf
    %v1261 = vmax.f32 %v1259, %v1260
    %v1262 = vrot.slane %v1261, 4
    %v1263 = vmax.f32 %v1261, %v1262
    %v1264 = vrot.slane %v1263, 2
    %v1265 = vmax.f32 %v1263, %v1264
    %v1266 = vrot.slane %v1265, 1
    %v1267 = vmax.f32 %v1265, %v1266
    %v1268 = vsel %vm1204, %v1202, -inf
    %v1269 = vsel %vm1204, %v1203, -inf
    %v1270 = vmax.f32 %v1268, %v1269
    %v1271 = vrot.slane %v1270, 4
    %v1272 = vmax.f32 %v1270, %v1271
    %v1273 = vrot.slane %v1272, 2
    %v1274 = vmax.f32 %v1272, %v1273
    %v1275 = vrot.slane %v1274, 1
    %v1276 = vmax.f32 %v1274, %v1275
    %1278 = vset.pattern.permute.xlu0 0
    %1279 = vperm.xlu0 %1278, %v1213
    %v1280 = vpop.permute.xlu0 %1279
    %1283 = vset.pattern.permute.xlu0 0
    %1284 = vperm.xlu0 %1283, %v1222
    %v1285 = vpop.permute.xlu0 %1284
    %1288 = vset.pattern.permute.xlu0 0
    %1289 = vperm.xlu0 %1288, %v1231
    %v1290 = vpop.permute.xlu0 %1289
    %1293 = vset.pattern.permute.xlu0 0
    %1294 = vperm.xlu0 %1293, %v1240
    %v1295 = vpop.permute.xlu0 %1294
    %1298 = vset.pattern.permute.xlu0 0
    %1299 = vperm.xlu0 %1298, %v1249
    %v1300 = vpop.permute.xlu0 %1299
    %1303 = vset.pattern.permute.xlu0 0
    %1304 = vperm.xlu0 %1303, %v1258
    %v1305 = vpop.permute.xlu0 %1304
    %1308 = vset.pattern.permute.xlu0 0
    %1309 = vperm.xlu0 %1308, %v1267
    %v1310 = vpop.permute.xlu0 %1309
    %1313 = vset.pattern.permute.xlu0 0
    %1314 = vperm.xlu0 %1313, %v1276
    %v1315 = vpop.permute.xlu0 %1314
    %v1317 = vlaneseq
    %v1318 = vshrl.u32 %v1317, 7
    %v1319 = vsub.s32 0, %v1318
    %v1320 = vrot.slane %v58, %v1319
    %v1321 = vmul.f32 %v1280, %v1320
    %v1322 = vmul.f32 %v1285, %v1320
    %v1323 = vmul.f32 %v1290, %v1320
    %v1324 = vmul.f32 %v1295, %v1320
    %v1325 = vmul.f32 %v1300, %v1320
    %v1326 = vmul.f32 %v1305, %v1320
    %v1327 = vmul.f32 %v1310, %v1320
    %v1328 = vmul.f32 %v1315, %v1320
    %1329 = vset.pattern.permute.xlu0 1
    %1330 = vperm.xlu0 %1329, %v1213
    %v1331 = vpop.permute.xlu0 %1330
    %1333 = vset.pattern.permute.xlu0 1
    %1334 = vperm.xlu0 %1333, %v1222
    %v1335 = vpop.permute.xlu0 %1334
    %1337 = vset.pattern.permute.xlu0 1
    %1338 = vperm.xlu0 %1337, %v1231
    %v1339 = vpop.permute.xlu0 %1338
    %1341 = vset.pattern.permute.xlu0 1
    %1342 = vperm.xlu0 %1341, %v1240
    %v1343 = vpop.permute.xlu0 %1342
    %1345 = vset.pattern.permute.xlu0 1
    %1346 = vperm.xlu0 %1345, %v1249
    %v1347 = vpop.permute.xlu0 %1346
    %1349 = vset.pattern.permute.xlu0 1
    %1350 = vperm.xlu0 %1349, %v1258
    %v1351 = vpop.permute.xlu0 %1350
    %1353 = vset.pattern.permute.xlu0 1
    %1354 = vperm.xlu0 %1353, %v1267
    %v1355 = vpop.permute.xlu0 %1354
    %1357 = vset.pattern.permute.xlu0 1
    %1358 = vperm.xlu0 %1357, %v1276
    %v1359 = vpop.permute.xlu0 %1358
    %v1361 = vlaneseq
    %v1362 = vshrl.u32 %v1361, 7
    %v1363 = vsub.s32 0, %v1362
    %v1364 = vrot.slane %v59, %v1363
    %v1365 = vmul.f32 %v1331, %v1364
    %v1366 = vmul.f32 %v1335, %v1364
    %v1367 = vmul.f32 %v1339, %v1364
    %v1368 = vmul.f32 %v1343, %v1364
    %v1369 = vmul.f32 %v1347, %v1364
    %v1370 = vmul.f32 %v1351, %v1364
    %v1371 = vmul.f32 %v1355, %v1364
    %v1372 = vmul.f32 %v1359, %v1364
    %v1373 = vadd.f32 %v1321, %v1365
    %v1374 = vadd.f32 %v1322, %v1366
    %v1375 = vadd.f32 %v1323, %v1367
    %v1376 = vadd.f32 %v1324, %v1368
    %v1377 = vadd.f32 %v1325, %v1369
    %v1378 = vadd.f32 %v1326, %v1370
    %v1379 = vadd.f32 %v1327, %v1371
    %v1380 = vadd.f32 %v1328, %v1372
    %v1382 = vlaneseq
    %v1383 = vshrl.u32 %v1382, 7
    %v1384 = vsub.s32 0, %v1383
    %v1385 = vrot.slane %v60, %v1384
    %v1387 = vadd.f32 %v1373, %v1385
    %v1388 = vadd.f32 %v1374, %v1385
    %v1389 = vadd.f32 %v1375, %v1385
    %v1390 = vadd.f32 %v1376, %v1385
    %v1391 = vadd.f32 %v1377, %v1385
    %v1392 = vadd.f32 %v1378, %v1385
    %v1393 = vadd.f32 %v1379, %v1385
    %v1394 = vadd.f32 %v1380, %v1385
    %v1403 = vrot.slane %v1388, 7
    %vm1404 = vcmask 1041409
    %v1405 = vsel %vm1404, %v1403, %v1387
    %v1406 = vrot.slane %v1389, 6
    %vm1407 = vcmask 1042434
    %v1408 = vsel %vm1407, %v1406, %v1405
    %v1409 = vrot.slane %v1390, 5
    %vm1410 = vcmask 1043459
    %v1411 = vsel %vm1410, %v1409, %v1408
    %v1412 = vrot.slane %v1391, 4
    %vm1413 = vcmask 1044484
    %v1414 = vsel %vm1413, %v1412, %v1411
    %v1415 = vrot.slane %v1392, 3
    %vm1416 = vcmask 1045509
    %v1417 = vsel %vm1416, %v1415, %v1414
    %v1418 = vrot.slane %v1393, 2
    %vm1419 = vcmask 1046534
    %v1420 = vsel %vm1419, %v1418, %v1417
    %v1421 = vrot.slane %v1394, 1
    %vm1422 = vcmask 1047559
    %v1423 = vsel %vm1422, %v1421, %v1420
    %1425 = vst [vmem:[#allocation5] sm:$0xff] %v1423
    // Predicated region
    $region30: #{tpu_custom_call.1} parent=1 // pred_check
      _
    $region31: #{tpu_custom_call.1} parent=1 // pred_check_branch
      %1427 = sbr.rel (0) target = $region33
    $region32: #{tpu_custom_call.1} parent=1 // pred_region
      %s1429 = ssub.s32 128, 128
      %1430 = vsyncadd [#allocation4], %s1429
      %s1432 = sshll.u32 [#allocation5], 4
      %s1433 = int_to_ptr.vmem [resolvable:$true] %s1432
      %1435 = dma.vmem_to_hbm [thread:$0]  %s1433, 128, %s6, [#allocation4]
    $region33: #{tpu_custom_call.1} parent=1 // pred_fallthru
      _
    // Predicated region
    $region34: #{tpu_custom_call.1} parent=1 // pred_check
      _
    $region35: #{tpu_custom_call.1} parent=1 // pred_check_branch
      %1437 = sbr.rel (0) target = $region37
    $region36: #{tpu_custom_call.1} parent=1 // pred_region
      %1438 = dma.done [#allocation4], 128
    $region37: #{tpu_custom_call.1} parent=1 // pred_fallthru
      _
    %1439 = vsyncpa [#allocation3], 1
    %1440 = vsyncpa [#allocation4], 1

</llo_original>
